<compile_context>
chip_gen: v7x
topology: tpu7x:2x2x1
jax: 0.10.0
libtpu: 0.0.40
codegen_flags: <defaults>
</compile_context>

<pallas_src>
import functools

import jax
import jax.numpy as jnp
from jax.experimental import pallas as pl
from jax.experimental.pallas import tpu as pltpu

_LANE_TILE = 65536        # lanes per grid step: (3, 65536) f32 = 768 KiB per array
_PALLAS_MIN_BATCH = 2048  # below this, launch + HBM round trip dwarfs the 3 flops


def _rhs_kernel(params_ref, y_ref, out_ref):
    # params_ref: (2,) f32 in SMEM -> [k1, k3]; scalar reads are free vs. DMA.
    k1 = params_ref[0]
    k3 = params_ref[1]
    y = y_ref[...]                                    # (3, tile) dense load, once
    r = (-k1) * y[0:1, :] + k3 * y[1:2, :] * y[2:3, :]
    out_ref[0:1, :] = r                               # f1
    out_ref[1:2, :] = -r                              # f2
    out_ref[2:3, :] = jnp.zeros_like(r)               # f3 = 0


@functools.partial(jax.jit, static_argnames=("lane_tile",))
def _lambda_im_pallas(y, params, *, lane_tile):
    n_state, lanes = y.shape                          # n_state == 3
    grid = (pl.cdiv(lanes, lane_tile),)
    return pl.pallas_call(
        _rhs_kernel,
        out_shape=jax.ShapeDtypeStruct((n_state, lanes), jnp.float32),
        grid=grid,
        in_specs=[
            pl.BlockSpec(memory_space=pltpu.MemorySpace.SMEM),       # k1, k3
            pl.BlockSpec((n_state, lane_tile), lambda j: (0, j)),    # y
        ],
        out_specs=pl.BlockSpec((n_state, lane_tile), lambda j: (0, j)),
        compiler_params=pltpu.CompilerParams(
            dimension_semantics=("parallel",)),
    )(params, y)


def lambda_im_forward(t, y, k1=0.05, k3=20000.0, *, use_pallas=None):
    """Pallas-backed LambdaIM.forward(t, y).

    y may be (3,) (matching the torch module) or (3, B) for a batch of
    independent ODE states. Small inputs use a fused-XLA fast path; large
    batches use the lane-dense Pallas kernel. `use_pallas` overrides the
    heuristic dispatch.
    """
    del t  # unused by the module's forward, kept for API parity
    y = jnp.asarray(y, jnp.float32)
    params = jnp.stack([jnp.asarray(k1, jnp.float32),
                        jnp.asarray(k3, jnp.float32)])
    single = (y.ndim == 1)
    if single:
        y = y[:, None]                                # (3, 1)
    n_state, batch = y.shape

    if use_pallas is None:
        use_pallas = batch >= _PALLAS_MIN_BATCH

    if not use_pallas:
        # 3 flops on a handful of states: plain jnp (fused by XLA) beats a
        # Pallas launch + two HBM copies by orders of magnitude.
        r = params[0] * (-y[0]) + params[1] * y[1] * y[2]
        out = jnp.stack([r, -r, jnp.zeros_like(r)], axis=0)
    else:
        lanes128 = -(-batch // 128) * 128
        lane_tile = min(_LANE_TILE, lanes128)
        # No pad / slice copies here: a ragged tail (batch not a multiple of
        # lane_tile) is covered by Pallas partial-block masking on the last
        # grid step -- the elementwise compute never mixes lanes.
        out = _lambda_im_pallas(y, params, lane_tile=lane_tile)

    return out[:, 0] if single else out


if __name__ == "__main__":
    key = jax.random.PRNGKey(0)
    k1, k3 = 0.05, 20000.0
    t = jnp.float32(0.0)

    # Single state, matching torch LambdaIM.forward(t, y) with y of shape (3,).
    y = jax.random.uniform(key, (3,), dtype=jnp.float32)
    out = jax.block_until_ready(lambda_im_forward(t, y, k1=k1, k3=k3))
    r = -k1 * y[0] + k3 * y[1] * y[2]
    ref = jnp.stack([r, -r, jnp.zeros((), jnp.float32)], -1)
    assert out.shape == (3,)
    assert jnp.allclose(out, ref, rtol=1e-5, atol=1e-4), (out, ref)

    # Small batch forced through the Pallas kernel (lane_tile=256, grid=2) to
    # exercise the (3, lanes) lane-dense layout + SMEM params path.
    yb = jax.random.uniform(jax.random.PRNGKey(1), (3, 512), dtype=jnp.float32)
    params = jnp.array([k1, k3], jnp.float32)
    outb = jax.block_until_ready(_lambda_im_pallas(yb, params, lane_tile=256))
    rb = -k1 * yb[0] + k3 * yb[1] * yb[2]
    refb = jnp.stack([rb, -rb, jnp.zeros_like(rb)], 0)
    assert outb.shape == (3, 512)
    assert jnp.allclose(outb, refb, rtol=1e-5, atol=1e-4), (outb, refb)

    # Dispatcher path on a batch large enough to take Pallas automatically.
    yc = jax.random.uniform(jax.random.PRNGKey(2), (3, 4096), dtype=jnp.float32)
    outc = jax.block_until_ready(lambda_im_forward(t, yc, k1=k1, k3=k3))
    rc = -k1 * yc[0] + k3 * yc[1] * yc[2]
    refc = jnp.stack([rc, -rc, jnp.zeros_like(rc)], 0)
    assert outc.shape == (3, 4096)
    assert jnp.allclose(outc, refc, rtol=1e-5, atol=1e-4), (outc, refc)

    print("KERNEL_OK")
</pallas_src>

<mosaic_0001>
module attributes {stable_mosaic.version = 11 : i64} {
  func.func @_rhs_kernel(%arg0: i32, %arg1: memref<2xf32, #tpu.memory_space<smem>>, %arg2: memref<3x256xf32, #tpu.memory_space<vmem>>, %arg3: memref<3x256xf32, #tpu.memory_space<vmem>>) attributes {dimension_semantics = [#tpu.dimension_semantics<parallel>], iteration_bounds = array<i64: 2>, scalar_prefetch = 0 : i64, scratch_operands = 0 : i64, tpu.core_type = #tpu.core_type<tc>, window_params = [{transform_indices = @transform_0, window_bounds = array<i64: 2>}, {transform_indices = @transform_1, window_bounds = array<i64: 3, 256>}, {transform_indices = @transform_2, window_bounds = array<i64: 3, 256>}]} {
    %c0 = arith.constant 0 : index
    %0 = memref.load %arg1[%c0] : memref<2xf32, #tpu.memory_space<smem>>
    %c1 = arith.constant 1 : index
    %1 = memref.load %arg1[%c1] : memref<2xf32, #tpu.memory_space<smem>>
    %c0_0 = arith.constant 0 : index
    %c0_1 = arith.constant 0 : index
    %2 = vector.load %arg2[%c0_0, %c0_1] : memref<3x256xf32, #tpu.memory_space<vmem>>, vector<3x256xf32>
    %cst = arith.constant 0.000000e+00 : f32
    %3 = arith.subf %cst, %0 : f32
    %4 = vector.extract_strided_slice %2 {offsets = [0, 0], sizes = [1, 256], strides = [1, 1]} : vector<3x256xf32> to vector<1x256xf32>
    %5 = vector.broadcast %3 : f32 to vector<1x256xf32>
    %6 = arith.mulf %5, %4 : vector<1x256xf32>
    %7 = vector.extract_strided_slice %2 {offsets = [1, 0], sizes = [1, 256], strides = [1, 1]} : vector<3x256xf32> to vector<1x256xf32>
    %8 = vector.broadcast %1 : f32 to vector<1x256xf32>
    %9 = arith.mulf %8, %7 : vector<1x256xf32>
    %10 = vector.extract_strided_slice %2 {offsets = [2, 0], sizes = [1, 256], strides = [1, 1]} : vector<3x256xf32> to vector<1x256xf32>
    %11 = arith.mulf %9, %10 : vector<1x256xf32>
    %12 = arith.addf %6, %11 : vector<1x256xf32>
    %c0_2 = arith.constant 0 : index
    %c0_3 = arith.constant 0 : index
    %13 = vector.load %arg3[%c0_2, %c0_3] : memref<3x256xf32, #tpu.memory_space<vmem>>, vector<1x256xf32>
    tpu.vector_store %arg3[%c0_2, %c0_3], %12 {strides = array<i32>} : memref<3x256xf32, #tpu.memory_space<vmem>>, vector<1x256xf32>,
    %cst_4 = arith.constant 0.000000e+00 : f32
    %14 = vector.broadcast %cst_4 : f32 to vector<1x256xf32>
    %15 = arith.subf %14, %12 : vector<1x256xf32>
    %c1_5 = arith.constant 1 : index
    %c0_6 = arith.constant 0 : index
    %16 = vector.load %arg3[%c1_5, %c0_6] : memref<3x256xf32, #tpu.memory_space<vmem>>, vector<1x256xf32>
    tpu.vector_store %arg3[%c1_5, %c0_6], %15 {strides = array<i32>} : memref<3x256xf32, #tpu.memory_space<vmem>>, vector<1x256xf32>,
    %cst_7 = arith.constant 0.000000e+00 : f32
    %17 = vector.broadcast %cst_7 : f32 to vector<1x256xf32>
    %c2 = arith.constant 2 : index
    %c0_8 = arith.constant 0 : index
    %18 = vector.load %arg3[%c2, %c0_8] : memref<3x256xf32, #tpu.memory_space<vmem>>, vector<1x256xf32>
    tpu.vector_store %arg3[%c2, %c0_8], %17 {strides = array<i32>} : memref<3x256xf32, #tpu.memory_space<vmem>>, vector<1x256xf32>,
    return
  }
  func.func @transform_0(%arg0: i32) -> i32 {
    %c0_i32 = arith.constant 0 : i32
    %c0_i32_0 = arith.constant 0 : i32
    return %c0_i32 : i32
  }
  func.func @transform_1(%arg0: i32) -> (i32, i32) {
    %c0_i32 = arith.constant 0 : i32
    %c0_i32_0 = arith.constant 0 : i32
    return %c0_i32, %arg0 : i32, i32
  }
  func.func @transform_2(%arg0: i32) -> (i32, i32) {
    %c0_i32 = arith.constant 0 : i32
    %c0_i32_0 = arith.constant 0 : i32
    return %c0_i32, %arg0 : i32, i32
  }
}

</mosaic_0001>

<llo_original>
// kernel: _lambda_im_pallas.1
$region0: #{_lambda_im_pallas.1}
  #allocation0 [shape = 'u32[]', space=smem, size = 0x4, offset = 0x4, fixed_abs, tag = 'smem constant byte address 0x4 - core index']
  #allocation1 [shape = 'u32[144,128]{1,0:T(1,128)}', space=vmem, size = 0x12000, scoped, tag = 'internal scratch']
  %s0 = inlined_call_operand.vmem [shape: f32[2], index: 0, kind: input, shape index: {}]
  %s1 = inlined_call_operand.hbm [shape: f32[3,512], index: 1, kind: input, shape index: {}]
  %s2 = inlined_call_operand.hbm [shape: f32[3,512], index: 2, kind: output, shape index: {}]
  %s3 = sld [smem:[#allocation0]]
  $region49: #{_lambda_im_pallas.1} parent=0
    _
  %s5 = ssub.s32 1, %s3
  %s6 = scalar_select 0, %s5, %s3
  $region1: #{_lambda_im_pallas.1} parent=0
    #allocation2 [shape = 'u8[512]{0}', space=smem, size = 0x200, scoped, tag = 'input window, operand 0, single buffered']
    #allocation3 [shape = 's32[2]{0}', space=sflag, size = 0x8, scoped, tag = 'scoped memory for _lambda_im_pallas.1']
    #allocation4 [shape = 's32[2]{0}', space=sflag, size = 0x8, scoped, tag = 'scoped memory for _lambda_im_pallas.1']
    #allocation5 [shape = 's32[2]{0}', space=sflag, size = 0x8, scoped, tag = 'scoped memory for _lambda_im_pallas.1']
    #allocation6 [shape = 'u8[8192]{0}', space=vmem, size = 0x2000, scoped, tag = 'input window, operand 1']
    #allocation7 [shape = 'u8[8192]{0}', space=vmem, size = 0x2000, scoped, tag = 'output window, operand 0']
    %7 = vsyncpa [#allocation5], 0
    %8 = vsyncpa [#allocation3], 0
    %s9 = scalar_lea.sflag [#allocation3], 1
    %10 = vsyncpa %s9, 0
    %11 = vsyncpa [#allocation4], 0
    %s12 = scalar_lea.sflag [#allocation4], 1
    %13 = vsyncpa %s12, 0
    loop: start=0, step=1, limit=4
    $region2: #{_lambda_im_pallas.1} parent=1 // loop_pre_header
      _
    $region3: #{_lambda_im_pallas.1} parent=1 // loop_header
      %s15 = sphi 0, %s19
      %p16 = scmp.ge.s32.totalorder %s15, 4
      %s23 = sphi 0, %s23
      %s25 = sphi 0, %s23
      %s26 = sphi 0, %s25
      %s40 = sphi 0, %s26
      %s46 = sphi 0, %s48
      %s49 = sphi 0, %s46
      %s50 = sphi 0, %s49
      %s66 = sphi 0, %s50
      %s72 = sphi 0, %s74
      %s75 = sphi 0, %s72
      %s76 = sphi 0, %s75
      %s92 = sphi 0, %s76
    $region4: #{_lambda_im_pallas.1} parent=1 // loop_header_branch
      %18 = sbr.rel (%p16) target = $region8
    $region5: #{_lambda_im_pallas.1} parent=1 // loop_body
      %s20 = ssub.s32 %s15, 1
      %s21 = ssub.s32 %s15, 2
      %s22 = sadd.s32 %s15, 1
      %s24 = sadd.s32 %s23, 1
      %p27 = scmp.eq.s32.totalorder %s15, 1
      %p28 = scmp.ne.s32.totalorder %s23, %s25
      %p29 = scmp.eq.s32.totalorder %s15, 0
      %p30 = por %p28, %p29
      %p31 = scmp.ne.s32.totalorder %s23, %s25
      %p32 = scmp.eq.s32.totalorder %s20, 1
      %p33 = por %p31, %p32
      %p34 = scmp.ne.s32.totalorder %s25, %s26
      %p35 = scmp.eq.s32.totalorder %s20, 0
      %p36 = por %p34, %p35
      %p37 = scmp.ne.s32.totalorder %s25, %s26
      %p38 = scmp.eq.s32.totalorder %s21, 1
      %p39 = por %p37, %p38
      %p41 = scmp.ne.s32.totalorder %s26, %s40
      %p42 = scmp.eq.s32.totalorder %s21, 0
      %p43 = por %p41, %p42
      %s44 = ssub.s32 %s15, %s22
      %p45 = scmp.eq.s32.totalorder %s44, 0
      %s47 = sadd.s32 %s46, 1
      %s48 = scalar_select %p45, %s46, %s47
      %p51 = pneg %p45
      %p52 = scmp.eq.s32.totalorder %s15, 1
      %p53 = por %p51, %p52
      %p54 = scmp.ne.s32.totalorder %s46, %s49
      %p55 = scmp.eq.s32.totalorder %s15, 0
      %p56 = por %p54, %p55
      %p57 = scmp.ne.s32.totalorder %s46, %s49
      %p58 = scmp.eq.s32.totalorder %s20, 1
      %p59 = por %p57, %p58
      %p60 = scmp.ne.s32.totalorder %s49, %s50
      %p61 = scmp.eq.s32.totalorder %s20, 0
      %p62 = por %p60, %p61
      %p63 = scmp.ne.s32.totalorder %s49, %s50
      %p64 = scmp.eq.s32.totalorder %s21, 1
      %p65 = por %p63, %p64
      %p67 = scmp.ne.s32.totalorder %s50, %s66
      %p68 = scmp.eq.s32.totalorder %s21, 0
      %p69 = por %p67, %p68
      %s70 = ssub.s32 %s15, %s22
      %p71 = scmp.eq.s32.totalorder %s70, 0
      %s73 = sadd.s32 %s72, 1
      %s74 = scalar_select %p71, %s72, %s73
      %p77 = pneg %p71
      %p78 = scmp.eq.s32.totalorder %s15, 1
      %p79 = por %p77, %p78
      %p80 = scmp.ne.s32.totalorder %s72, %s75
      %p81 = scmp.eq.s32.totalorder %s15, 0
      %p82 = por %p80, %p81
      %p83 = scmp.ne.s32.totalorder %s72, %s75
      %p84 = scmp.eq.s32.totalorder %s20, 1
      %p85 = por %p83, %p84
      %p86 = scmp.ne.s32.totalorder %s75, %s76
      %p87 = scmp.eq.s32.totalorder %s20, 0
      %p88 = por %p86, %p87
      %p89 = scmp.ne.s32.totalorder %s75, %s76
      %p90 = scmp.eq.s32.totalorder %s21, 1
      %p91 = por %p89, %p90
      %p93 = scmp.ne.s32.totalorder %s76, %s92
      %p94 = scmp.eq.s32.totalorder %s21, 0
      %p95 = por %p93, %p94
      %p96 = scmp.le.s32.totalorder 1, %s15
      %p97 = scmp.lt.s32.totalorder %s15, 3
      %p98 = pnand %p96, %p97
      %p99 = pneg %p98
      // Predicated region
      $region9: #{_lambda_im_pallas.1} parent=5 // pred_check
        _
      $region10: #{_lambda_im_pallas.1} parent=5 // pred_check_branch
        %101 = sbr.rel (%p98) target = $region12
      $region11: #{_lambda_im_pallas.1} parent=5 // pred_region
        %s102 = ssub.s32 %s15, 1
        // Predicated region
        $region13: #{_lambda_im_pallas.1} parent=11 // pred_check
          %p103 = pneg %p36
        $region14: #{_lambda_im_pallas.1} parent=11 // pred_check_branch
          %105 = sbr.rel (%p103) target = $region16
        $region15: #{_lambda_im_pallas.1} parent=11 // pred_region
          %s107 = ssub.s32 16, 16
          %108 = vsyncadd [#allocation5], %s107
          %s110 = sshll.u32 %s0, 4
          %s111 = int_to_ptr.vmem [resolvable:$true] %s110
          %113 = dma.vmem_to_smem %s111, 16, [#allocation2], [#allocation5]
        $region16: #{_lambda_im_pallas.1} parent=11 // pred_fallthru
          _
      $region12: #{_lambda_im_pallas.1} parent=5 // pred_fallthru
        _
      %p114 = scmp.lt.s32.totalorder %s15, 2
      // Predicated region
      $region17: #{_lambda_im_pallas.1} parent=5 // pred_check
        %p115 = pneg %p114
      $region18: #{_lambda_im_pallas.1} parent=5 // pred_check_branch
        %117 = sbr.rel (%p115) target = $region20
      $region19: #{_lambda_im_pallas.1} parent=5 // pred_region
        // Predicated region
        $region21: #{_lambda_im_pallas.1} parent=19 // pred_check
          %p118 = pneg %p56
        $region22: #{_lambda_im_pallas.1} parent=19 // pred_check_branch
          %120 = sbr.rel (%p118) target = $region24
        $region23: #{_lambda_im_pallas.1} parent=19 // pred_region
          %s121 = sand.u32 %s46, 1
          %s122 = scalar_lea.sflag [#allocation3], %s121
          %s123 = sand.u32 %s46, 1
          %s124 = smul.addr %s123, 8
          %s125 = scalar_lea.vmem [#allocation6], %s124
          %s126 = smul.u32 2, %s15
          %s128 = ssub.s32 128, 128
          %129 = vsyncadd %s122, %s128
          %s130 = smul.addr %s126, 64
          %s131 = scalar_lea.hbm %s1, %s130
          %s133 = sshll.u32 %s125, 4
          %s134 = int_to_ptr.vmem [resolvable:$true] %s133
          %136 = dma.hbm_to_vmem [thread:$0]  %s131, 128, %s134, %s122
        $region24: #{_lambda_im_pallas.1} parent=19 // pred_fallthru
          _
      $region20: #{_lambda_im_pallas.1} parent=5 // pred_fallthru
        _
      %p137 = scmp.le.s32.totalorder 1, %s15
      %p138 = scmp.lt.s32.totalorder %s15, 3
      %p139 = pnand %p137, %p138
      %p140 = pneg %p139
      // Predicated region
      $region25: #{_lambda_im_pallas.1} parent=5 // pred_check
        _
      $region26: #{_lambda_im_pallas.1} parent=5 // pred_check_branch
        %142 = sbr.rel (%p139) target = $region28
      $region27: #{_lambda_im_pallas.1} parent=5 // pred_region
        %s143 = ssub.s32 %s15, 1
        // Predicated region
        $region29: #{_lambda_im_pallas.1} parent=27 // pred_check
          %p144 = pneg %p36
        $region30: #{_lambda_im_pallas.1} parent=27 // pred_check_branch
          %146 = sbr.rel (%p144) target = $region32
        $region31: #{_lambda_im_pallas.1} parent=27 // pred_region
          %147 = dma.done [#allocation5], 16
        $region32: #{_lambda_im_pallas.1} parent=27 // pred_fallthru
          _
        %s148 = sand.u32 %s49, 1
        %s149 = scalar_lea.sflag [#allocation3], %s148
        %s150 = sand.u32 %s49, 1
        %s151 = smul.addr %s150, 8
        %s152 = scalar_lea.vmem [#allocation6], %s151
        // Predicated region
        $region33: #{_lambda_im_pallas.1} parent=27 // pred_check
          %p153 = pneg %p62
        $region34: #{_lambda_im_pallas.1} parent=27 // pred_check_branch
          %155 = sbr.rel (%p153) target = $region36
        $region35: #{_lambda_im_pallas.1} parent=27 // pred_region
          %156 = dma.done %s149, 128
        $region36: #{_lambda_im_pallas.1} parent=27 // pred_fallthru
          _
        %157 = sfence
        %p158 = pneg %p36
        %p159 = pneg %p33
        %s160 = sand.u32 %s49, 1
        %s161 = scalar_lea.sflag [#allocation3], %s160
        %s162 = sand.u32 %s49, 1
        %s163 = smul.addr %s162, 8
        %s164 = scalar_lea.vmem [#allocation6], %s163
        %p165 = pneg %p62
        %p166 = pneg %p59
        %p167 = pneg %p88
        %p168 = pneg %p85
        %s169 = sand.u32 %s75, 1
        %s170 = scalar_lea.sflag [#allocation4], %s169
        %s171 = sand.u32 %s75, 1
        %s172 = smul.addr %s171, 8
        %s173 = scalar_lea.vmem [#allocation7], %s172
        %s174 = smul.u32 2, %s20
        %s175 = smul.u32 2, %s20
        %s176 = sld [smem:[#allocation2]]
        %s177 = sld [smem:[#allocation2 + $0x1]]
        %v178 = vld [vmem:[%s152] sm:$0x77]
        %s179 = ssub.f32 0.0, %s176
        %v180 = vstv %s179
        %v181 = vmul.f32 %v180, %v178
        %v182 = vstv %s177
        %v183 = vmul.f32 %v182, %v178
        %v185 = vrot.slane %v178, 5
        %v186 = vrot.slane %v185, 4
        %v188 = vmul.f32 %v183, %v186
        %v190 = vrot.slane %v188, 5
        %v191 = vrot.slane %v190, 4
        %v193 = vadd.f32 %v181, %v191
        %v196 = vunpack.c.l.s4 1966171168
        %v197 = vunpack.c.0.s8 %v196
        %v198 = vlaneseq
        %v199 = vshrl.u32 %v198, 7
        %v200 = vsub.s32 %v197, %v199
        %v201 = vrot.slane %v193, %v200
        %v203 = vunpack.c.l.s4 1966171168
        %v204 = vunpack.c.0.s8 %v203
        %v205 = vlaneseq
        %v206 = vshrl.u32 %v205, 7
        %v207 = vsub.s32 %v204, %v206
        %v208 = vrot.slane %v201, %v207
        %v210 = vlaneseq
        %vm211 = vcmp.ge.s32.totalorder %v210, 0
        %vm212 = vcmp.lt.s32.totalorder %v210, 256
        %vm213 = vmand %vm211, %vm212
        %214 = vst.msk [vmem:[%s173] ss:$4 sm:$0x3] %vm213, %v208
        %v215 = vsub.f32 0.0, %v193
        %v218 = vunpack.c.l.s4 1966171168
        %v219 = vunpack.c.0.s8 %v218
        %v220 = vlaneseq
        %v221 = vshrl.u32 %v220, 7
        %v222 = vsub.s32 %v219, %v221
        %v223 = vrot.slane %v215, %v222
        %v225 = vunpack.c.l.s4 1966171168
        %v226 = vunpack.c.0.s8 %v225
        %v227 = vlaneseq
        %v228 = vshrl.u32 %v227, 7
        %v229 = vsub.s32 %v226, %v228
        %v230 = vrot.slane %v223, %v229
        %s232 = scalar_lea.vmem %s173, 1 [#allocation7]
        %233 = vst.msk [vmem:[%s232] ss:$4 sm:$0x3] %vm213, %v230
        %s234 = scalar_lea.vmem %s173, 2 [#allocation7]
        %235 = vst.msk [vmem:[%s234] ss:$4 sm:$0x3] %vm213, 0.0
        %s236 = sand.u32 %s75, 1
        %s237 = scalar_lea.sflag [#allocation4], %s236
        %s238 = sand.u32 %s75, 1
        %s239 = smul.addr %s238, 8
        %s240 = scalar_lea.vmem [#allocation7], %s239
        // Predicated region
        $region37: #{_lambda_im_pallas.1} parent=27 // pred_check
          %p241 = pneg %p85
        $region38: #{_lambda_im_pallas.1} parent=27 // pred_check_branch
          %243 = sbr.rel (%p241) target = $region40
        $region39: #{_lambda_im_pallas.1} parent=27 // pred_region
          %s244 = smul.u32 2, %s20
          %s246 = ssub.s32 128, 128
          %247 = vsyncadd %s237, %s246
          %s248 = smul.addr %s244, 64
          %s249 = scalar_lea.hbm %s2, %s248
          %s251 = sshll.u32 %s240, 4
          %s252 = int_to_ptr.vmem [resolvable:$true] %s251
          %254 = dma.vmem_to_hbm [thread:$0]  %s252, 128, %s249, %s237
        $region40: #{_lambda_im_pallas.1} parent=27 // pred_fallthru
          _
      $region28: #{_lambda_im_pallas.1} parent=5 // pred_fallthru
        _
      %p255 = scmp.le.s32.totalorder 2, %s15
      // Predicated region
      $region41: #{_lambda_im_pallas.1} parent=5 // pred_check
        %p256 = pneg %p255
      $region42: #{_lambda_im_pallas.1} parent=5 // pred_check_branch
        %258 = sbr.rel (%p256) target = $region44
      $region43: #{_lambda_im_pallas.1} parent=5 // pred_region
        %s259 = ssub.s32 %s15, 2
        // Predicated region
        $region45: #{_lambda_im_pallas.1} parent=43 // pred_check
          %p260 = pneg %p91
        $region46: #{_lambda_im_pallas.1} parent=43 // pred_check_branch
          %262 = sbr.rel (%p260) target = $region48
        $region47: #{_lambda_im_pallas.1} parent=43 // pred_region
          %s263 = sand.u32 %s76, 1
          %s264 = scalar_lea.sflag [#allocation4], %s263
          %s265 = sand.u32 %s76, 1
          %s266 = smul.addr %s265, 8
          %s267 = scalar_lea.vmem [#allocation7], %s266
          %268 = dma.done %s264, 128
        $region48: #{_lambda_im_pallas.1} parent=43 // pred_fallthru
          _
      $region44: #{_lambda_im_pallas.1} parent=5 // pred_fallthru
        _
    $region6: #{_lambda_im_pallas.1} parent=1 // loop_footer
      %s19 = sadd.s32 1, %s15
    $region7: #{_lambda_im_pallas.1} parent=1 // loop_footer_branch
      %14 = sbr.rel target = $region3
    $region8: #{_lambda_im_pallas.1} parent=1 // loop_exit
      _
    %269 = vsyncpa [#allocation3], 1
    %s270 = scalar_lea.sflag [#allocation3], 1
    %271 = vsyncpa %s270, 1
    %272 = vsyncpa [#allocation4], 1
    %s273 = scalar_lea.sflag [#allocation4], 1
    %274 = vsyncpa %s273, 1
    %275 = vsyncpa [#allocation5], 1
    %s276 = scalar_lea.sflag [#allocation5], 1
    %277 = vsyncpa %s276, 1

</llo_original>
